<compile_context>
chip_gen: v5e
topology: v5e:2x2
jax: 0.10.0
libtpu: 0.0.40
codegen_flags: <defaults>
</compile_context>

<pallas_src>
import math

import jax
import jax.numpy as jnp
import numpy as np
from jax import lax
from jax.experimental import pallas as pl
from jax.experimental.pallas import tpu as pltpu


# ----------------------------- Config (mirrors the PyTorch Config) -----------------
class Config:
    vocab_size = 3
    d_model = 16
    n_layers = 4
    n_heads = 4
    d_kv_comp = 6
    d_rope = 4
    seq_len = 500
    batch_size = 8
    ffn_dim = 128


config = Config()
D_HEAD = config.d_model // config.n_heads          # 4
SPLIT_DIM = D_HEAD - config.d_rope                 # 0 -> W_uk / W_uq are Linear(.., 0): no-ops
# TODO(synk): only the SPLIT_DIM == 0 path is implemented (W_uk / W_uq have zero output
# features for this config and contribute nothing); d_rope < d_head is unsupported.
assert SPLIT_DIM == 0


def _round_up(x, m):
    return ((x + m - 1) // m) * m


# ----------------------------- Rotary tables (glue) --------------------------------
def rotary_cos_sin(seq_len, dim, scale=40.0):
    # Exactly mirrors RotaryEmbedding: inv_freq uses arange(0, dim//2, 2), so the table
    # width is 2 * len(arange(0, dim//2, 2)) (== dim//2 == 2 here).
    inv_freq = 1.0 / (10000.0 ** (np.arange(0, dim // 2, 2, dtype=np.float32) / (dim // 2)))
    t = np.arange(seq_len, dtype=np.float32) / scale
    freqs = np.einsum("i,j->ij", t, inv_freq)
    emb = np.concatenate([freqs, freqs], axis=-1)          # (S, d_cos)
    return np.cos(emb), np.sin(emb)


def build_rotary_operands(seq_len, seq_pad, n_heads, d_rope, scale=40.0):
    """(seq_pad, H*d_rope) cos/sin tables + block-diagonal 'rotate_half' matrix R so
    rotary for ALL heads is one VPU pass + one tiny MXU matmul:
        rot(x) = x * COS + (x @ R) * SIN
    Pass-through columns get COS=1, SIN=0; padded rows are don't-care."""
    cos, sin = rotary_cos_sin(seq_len, d_rope, scale)
    d_cos = cos.shape[-1]
    half = d_cos // 2

    cos_h = np.ones((seq_pad, d_rope), np.float32)
    sin_h = np.zeros((seq_pad, d_rope), np.float32)
    cos_h[:seq_len, :d_cos] = cos
    sin_h[:seq_len, :d_cos] = sin
    cos_full = np.tile(cos_h, (1, n_heads))                # (S_pad, H*d_rope)
    sin_full = np.tile(sin_h, (1, n_heads))

    w = n_heads * d_rope
    rmat = np.zeros((w, w), np.float32)
    for h in range(n_heads):
        o = h * d_rope
        for c in range(half):
            rmat[o + c + half, o + c] = -1.0               # rh[:, c]      = -x[:, c+half]
            rmat[o + c, o + c + half] = 1.0                # rh[:, c+half] = +x[:, c]
    return jnp.asarray(cos_full), jnp.asarray(sin_full), jnp.asarray(rmat)


# ----------------------------- Pallas kernel ----------------------------------------
def make_mla_kernel(s_pad, s_valid, n_heads, d_rope, d_comp, d_model, exp_bf16):
    def kernel(h_ref, cos_ref, sin_ref, rmat_ref,
               w_in, b_in, w_qr, b_qr, w_vp, b_fin, o_ref):
        f32 = jnp.float32
        bf16 = jnp.bfloat16
        x = h_ref[...]                                                     # (S_pad, D)

        # Single fused input projection: [c_kv | c_q | k_rot(pre-rotary)] (28 lanes).
        proj = jnp.dot(x, w_in[...], preferred_element_type=f32) + b_in[...]
        c_kv = proj[:, :d_comp]
        c_q = proj[:, d_comp:2 * d_comp]
        k_pre = proj[:, 2 * d_comp:]

        # Q projection; the 1/sqrt(d_head) score scale was folded into w_qr/b_qr.
        q_pre = jnp.dot(c_q, w_qr[...], preferred_element_type=f32) + b_qr[...]

        # V with the output projection pre-fused per head (width H*D); b_uv / b_out
        # were folded into the single final bias b_fin in the wrapper.
        v_proj = jnp.dot(c_kv, w_vp[...], preferred_element_type=f32)     # (S_pad, H*D)

        # Rotary for all heads in one pass (rotate_half = tiny block-diag MXU matmul).
        cosf, sinf, rm = cos_ref[...], sin_ref[...], rmat_ref[...]
        q_all = q_pre * cosf + jnp.dot(q_pre, rm, preferred_element_type=f32) * sinf
        k_all = k_pre * cosf + jnp.dot(k_pre, rm, preferred_element_type=f32) * sinf

        # Head-major operands for a single batched attention; bf16 MXU operands with
        # f32 accumulation.
        qh = jnp.stack([q_all[:, h * d_rope:(h + 1) * d_rope]
                        for h in range(n_heads)]).astype(bf16)            # (H, S_pad, dr)
        kh = jnp.stack([k_all[:, h * d_rope:(h + 1) * d_rope]
                        for h in range(n_heads)]).astype(bf16)            # (H, S_pad, dr)
        vh = jnp.stack([v_proj[:, h * d_model:(h + 1) * d_model]
                        for h in range(n_heads)]).astype(bf16)            # (H, S_pad, D)

        # Batched QK^T over the head axis.
        s = jnp.einsum("hqd,hkd->hqk", qh, kh,
                       preferred_element_type=f32)                        # (H, S_pad, S_pad)

        if s_pad != s_valid:
            # Mask padded KEY positions out of the softmax (correctness requirement).
            key_pos = lax.broadcasted_iota(jnp.int32, (1, 1, s_pad), 2)
            s = jnp.where(key_pos < s_valid, s, jnp.float32(-1e30))

        m = jnp.max(s, axis=-1, keepdims=True)
        if exp_bf16:
            # bf16 VPU/EUP path (v6e / v7x); row-sum still accumulated in f32.
            p = jnp.exp((s - m).astype(bf16))
            l = jnp.sum(p, axis=-1, keepdims=True, dtype=f32)
        else:
            # f32 path (v5e has no bf16 VPU/EUP).
            e = jnp.exp(s - m)
            l = jnp.sum(e, axis=-1, keepdims=True)
            p = e.astype(bf16)

        # Batched PV matmul, deferred softmax normalization (EUP reciprocal), head sum.
        pv = jnp.einsum("hqk,hkd->hqd", p, vh, preferred_element_type=f32)  # (H, S_pad, D)
        y = jnp.sum(pv * pl.reciprocal(l, approx=True), axis=0)             # (S_pad, D)

        o_ref[...] = (y + b_fin[...]).astype(o_ref.dtype)                   # one full-block store

    return kernel


def _use_bf16_softmax():
    # bf16 VPU/EUP exists on v6e / v7x; keep exp/softmax arithmetic f32 on v5e & older.
    try:
        kind = jax.devices()[0].device_kind.lower()
    except Exception:
        return False
    return any(tag in kind for tag in ("v6", "v7", "7x"))


# ----------------------------- Wrapper ----------------------------------------------
def mla_forward(h, params):
    B, S, D = h.shape
    H, dh, dr, dc = config.n_heads, D_HEAD, config.d_rope, config.d_kv_comp
    inv_sqrt = 1.0 / math.sqrt(dh)

    # ---- free wrapper-side algebraic fusions (weight preprocessing) ----
    # 1) one fused projection for the three consumers of h: [W_dkv | W_dq | W_kr]
    w_in = jnp.concatenate([params["w_dkv"], params["w_dq"], params["w_kr"]], axis=1)
    b_in = jnp.concatenate([params["b_dkv"], params["b_dq"], params["b_kr"]], axis=1)
    # 2) fold the 1/sqrt(d_head) score scale into the q projection
    w_qr_s = params["w_qr"] * inv_sqrt
    b_qr_s = params["b_qr"] * inv_sqrt
    # 3) fold the output projection into W_uv per head; since softmax rows sum to 1,
    #    b_uv can be pushed through W_out into one final bias with b_out.
    w_out_h = params["w_out"].reshape(H, dh, D)                          # (H, dh, D)
    w_uv_h = params["w_uv"].reshape(dc, H, dh)                           # (dc, H, dh)
    w_vp = jnp.einsum("chd,hdo->cho", w_uv_h, w_out_h).reshape(dc, H * D)
    b_fin = params["b_out"] + jnp.einsum("hd,hdo->o",
                                         params["b_uv"].reshape(H, dh), w_out_h)[None, :]

    # ---- pad S to a sublane multiple; flatten batch in HBM (free reshape) ----
    S_pad = _round_up(S, 8)
    h_p = jnp.pad(h, ((0, 0), (0, S_pad - S), (0, 0))) if S_pad != S else h
    h_flat = h_p.reshape(B * S_pad, D)

    cos_full, sin_full, rmat = build_rotary_operands(S, S_pad, H, dr)

    weights = [w_in, b_in, w_qr_s, b_qr_s, w_vp, b_fin]

    # Grid-invariant operands (constant block index -> kept resident, not re-DMA'd).
    def full_spec(arr):
        nd = arr.ndim
        return pl.BlockSpec(arr.shape, lambda i, _nd=nd: (0,) * _nd)

    in_specs = ([pl.BlockSpec((S_pad, D), lambda i: (i, 0))]
                + [full_spec(a) for a in (cos_full, sin_full, rmat)]
                + [full_spec(w) for w in weights])

    kernel = make_mla_kernel(S_pad, S, H, dr, dc, D, _use_bf16_softmax())

    # VMEM is dominated by the (H, S_pad, S_pad) scores/probs; size the scoped limit to
    # that plus slack instead of a blanket 32 MiB (v7x has only 64 MiB per TensorCore).
    vmem_limit = int(min(64 * 1024 * 1024,
                         max(4 * 1024 * 1024, 3 * H * S_pad * S_pad * 4 + (2 << 20))))

    out_flat = pl.pallas_call(
        kernel,
        out_shape=jax.ShapeDtypeStruct((B * S_pad, D), h.dtype),
        grid=(B,),
        in_specs=in_specs,
        out_specs=pl.BlockSpec((S_pad, D), lambda i: (i, 0)),
        compiler_params=pltpu.CompilerParams(
            dimension_semantics=("parallel",),
            vmem_limit_bytes=vmem_limit),
    )(h_flat, cos_full, sin_full, rmat, *weights)

    out = out_flat.reshape(B, S_pad, D)
    return out[:, :S, :] if S_pad != S else out


# ----------------------------- Pure-JAX reference (for verification) ----------------
def mla_reference(h, params):
    B, S, D = h.shape
    H, dh, dr = config.n_heads, D_HEAD, config.d_rope
    cos_np, sin_np = rotary_cos_sin(S, dr)
    cos, sin = jnp.asarray(cos_np), jnp.asarray(sin_np)
    d_cos = cos.shape[-1]

    def lin(x, w, b):
        return x @ w + b[0]

    c_kv = lin(h, params["w_dkv"], params["b_dkv"])
    c_q = lin(h, params["w_dq"], params["b_dq"])
    v = lin(c_kv, params["w_uv"], params["b_uv"]).reshape(B, S, H, dh)
    q_rot = lin(c_q, params["w_qr"], params["b_qr"]).reshape(B, S, H, dr)
    k_rot = lin(h, params["w_kr"], params["b_kr"]).reshape(B, S, H, dr)

    c4 = cos[None, :, None, :]
    s4 = sin[None, :, None, :]

    def rot(x):
        xr, xb = x[..., :d_cos], x[..., d_cos:]
        half = d_cos // 2
        rh = jnp.concatenate([-xr[..., half:], xr[..., :half]], axis=-1)
        xr = xr * c4 + rh * s4
        return jnp.concatenate([xr, xb], axis=-1)

    q = rot(q_rot)
    k = rot(k_rot)

    scores = jnp.einsum("bqhd,bkhd->bhqk", q, k) / math.sqrt(dh)
    attn = jax.nn.softmax(scores, axis=-1)
    out = jnp.einsum("bhqk,bkhd->bqhd", attn, v).reshape(B, S, H * dh)
    return lin(out, params["w_out"], params["b_out"])


# ----------------------------- Parameter init ---------------------------------------
def init_params(key):
    def linear(k, din, dout):
        k1, k2 = jax.random.split(k)
        bound = 1.0 / math.sqrt(din)
        w = jax.random.uniform(k1, (din, dout), jnp.float32, -bound, bound)
        b = jax.random.uniform(k2, (1, dout), jnp.float32, -bound, bound)
        return w, b

    names_dims = [
        ("dkv", config.d_model, config.d_kv_comp),
        ("dq", config.d_model, config.d_kv_comp),
        ("uv", config.d_kv_comp, config.n_heads * D_HEAD),
        ("qr", config.d_kv_comp, config.n_heads * config.d_rope),
        ("kr", config.d_model, config.n_heads * config.d_rope),
        ("out", config.n_heads * D_HEAD, config.d_model),
    ]
    # W_uk / W_uq are zero-sized Linear(.., 0) layers for this config — nothing to init.

    params = {}
    keys = jax.random.split(key, len(names_dims))
    for k, (name, din, dout) in zip(keys, names_dims):
        w, b = linear(k, din, dout)
        params[f"w_{name}"] = w
        params[f"b_{name}"] = b
    return params


# ----------------------------- Main ---------------------------------------------------
if __name__ == "__main__":
    B, S = 2, 12  # small demo shapes (S=12 exercises the pad-to-16 + key-mask path)

    key = jax.random.PRNGKey(0)
    k_h, k_p = jax.random.split(key)
    h = jax.random.normal(k_h, (B, S, config.d_model), dtype=jnp.float32)
    params = init_params(k_p)

    out = jax.block_until_ready(mla_forward(h, params))
    ref = jax.block_until_ready(mla_reference(h, params))

    # Tolerance covers bf16 MXU operands (q/k, probabilities, fused v) and the
    # approximate EUP reciprocal used for the softmax denominator.
    np.testing.assert_allclose(np.asarray(out), np.asarray(ref), atol=3e-2, rtol=3e-2)

    print("KERNEL_OK")
</pallas_src>

<mosaic_0001>
module attributes {stable_mosaic.version = 11 : i64} {
  func.func @kernel(%arg0: i32, %arg1: memref<16x16xf32, #tpu.memory_space<vmem>>, %arg2: memref<16x16xf32, #tpu.memory_space<vmem>>, %arg3: memref<16x16xf32, #tpu.memory_space<vmem>>, %arg4: memref<16x16xf32, #tpu.memory_space<vmem>>, %arg5: memref<16x28xf32, #tpu.memory_space<vmem>>, %arg6: memref<1x28xf32, #tpu.memory_space<vmem>>, %arg7: memref<6x16xf32, #tpu.memory_space<vmem>>, %arg8: memref<1x16xf32, #tpu.memory_space<vmem>>, %arg9: memref<6x64xf32, #tpu.memory_space<vmem>>, %arg10: memref<1x16xf32, #tpu.memory_space<vmem>>, %arg11: memref<16x16xf32, #tpu.memory_space<vmem>>) attributes {dimension_semantics = [#tpu.dimension_semantics<parallel>], iteration_bounds = array<i64: 2>, scalar_prefetch = 0 : i64, scratch_operands = 0 : i64, tpu.core_type = #tpu.core_type<tc>, window_params = [{transform_indices = @transform_0, window_bounds = array<i64: 16, 16>}, {pipeline_mode = #tpu.pipeline_mode<synchronous>, transform_indices = @transform_1, window_bounds = array<i64: 16, 16>}, {pipeline_mode = #tpu.pipeline_mode<synchronous>, transform_indices = @transform_2, window_bounds = array<i64: 16, 16>}, {pipeline_mode = #tpu.pipeline_mode<synchronous>, transform_indices = @transform_3, window_bounds = array<i64: 16, 16>}, {pipeline_mode = #tpu.pipeline_mode<synchronous>, transform_indices = @transform_4, window_bounds = array<i64: 16, 28>}, {pipeline_mode = #tpu.pipeline_mode<synchronous>, transform_indices = @transform_5, window_bounds = array<i64: 1, 28>}, {pipeline_mode = #tpu.pipeline_mode<synchronous>, transform_indices = @transform_6, window_bounds = array<i64: 6, 16>}, {pipeline_mode = #tpu.pipeline_mode<synchronous>, transform_indices = @transform_7, window_bounds = array<i64: 1, 16>}, {pipeline_mode = #tpu.pipeline_mode<synchronous>, transform_indices = @transform_8, window_bounds = array<i64: 6, 64>}, {pipeline_mode = #tpu.pipeline_mode<synchronous>, transform_indices = @transform_9, window_bounds = array<i64: 1, 16>}, {transform_indices = @transform_10, window_bounds = array<i64: 16, 16>}]} {
    %c0 = arith.constant 0 : index
    %c0_0 = arith.constant 0 : index
    %0 = vector.load %arg1[%c0, %c0_0] : memref<16x16xf32, #tpu.memory_space<vmem>>, vector<16x16xf32>
    %c0_1 = arith.constant 0 : index
    %c0_2 = arith.constant 0 : index
    %1 = vector.load %arg5[%c0_1, %c0_2] : memref<16x28xf32, #tpu.memory_space<vmem>>, vector<16x28xf32>
    %cst = arith.constant dense<0.000000e+00> : vector<16x28xf32>
    %2 = tpu.matmul %0, %1, %cst {dimension_numbers = #tpu.dot_dimension_numbers<[1], [0], [0], [1], [0, 0, 1, 1], [], []>} : vector<16x16xf32>, vector<16x28xf32>, vector<16x28xf32> -> vector<16x28xf32>
    %c0_3 = arith.constant 0 : index
    %c0_4 = arith.constant 0 : index
    %3 = vector.load %arg6[%c0_3, %c0_4] : memref<1x28xf32, #tpu.memory_space<vmem>>, vector<1x28xf32>
    %4 = vector.broadcast %3 : vector<1x28xf32> to vector<16x28xf32>
    %5 = arith.addf %2, %4 : vector<16x28xf32>
    %6 = vector.extract_strided_slice %5 {offsets = [0, 0], sizes = [16, 6], strides = [1, 1]} : vector<16x28xf32> to vector<16x6xf32>
    %7 = vector.extract_strided_slice %5 {offsets = [0, 6], sizes = [16, 6], strides = [1, 1]} : vector<16x28xf32> to vector<16x6xf32>
    %8 = vector.extract_strided_slice %5 {offsets = [0, 12], sizes = [16, 16], strides = [1, 1]} : vector<16x28xf32> to vector<16x16xf32>
    %c0_5 = arith.constant 0 : index
    %c0_6 = arith.constant 0 : index
    %9 = vector.load %arg7[%c0_5, %c0_6] : memref<6x16xf32, #tpu.memory_space<vmem>>, vector<6x16xf32>
    %cst_7 = arith.constant dense<0.000000e+00> : vector<16x16xf32>
    %10 = tpu.matmul %7, %9, %cst_7 {dimension_numbers = #tpu.dot_dimension_numbers<[1], [0], [0], [1], [0, 0, 1, 1], [], []>} : vector<16x6xf32>, vector<6x16xf32>, vector<16x16xf32> -> vector<16x16xf32>
    %c0_8 = arith.constant 0 : index
    %c0_9 = arith.constant 0 : index
    %11 = vector.load %arg8[%c0_8, %c0_9] : memref<1x16xf32, #tpu.memory_space<vmem>>, vector<1x16xf32>
    %12 = vector.broadcast %11 : vector<1x16xf32> to vector<16x16xf32>
    %13 = arith.addf %10, %12 : vector<16x16xf32>
    %c0_10 = arith.constant 0 : index
    %c0_11 = arith.constant 0 : index
    %14 = vector.load %arg9[%c0_10, %c0_11] : memref<6x64xf32, #tpu.memory_space<vmem>>, vector<6x64xf32>
    %cst_12 = arith.constant dense<0.000000e+00> : vector<16x64xf32>
    %15 = tpu.matmul %6, %14, %cst_12 {dimension_numbers = #tpu.dot_dimension_numbers<[1], [0], [0], [1], [0, 0, 1, 1], [], []>} : vector<16x6xf32>, vector<6x64xf32>, vector<16x64xf32> -> vector<16x64xf32>
    %c0_13 = arith.constant 0 : index
    %c0_14 = arith.constant 0 : index
    %16 = vector.load %arg2[%c0_13, %c0_14] : memref<16x16xf32, #tpu.memory_space<vmem>>, vector<16x16xf32>
    %c0_15 = arith.constant 0 : index
    %c0_16 = arith.constant 0 : index
    %17 = vector.load %arg3[%c0_15, %c0_16] : memref<16x16xf32, #tpu.memory_space<vmem>>, vector<16x16xf32>
    %c0_17 = arith.constant 0 : index
    %c0_18 = arith.constant 0 : index
    %18 = vector.load %arg4[%c0_17, %c0_18] : memref<16x16xf32, #tpu.memory_space<vmem>>, vector<16x16xf32>
    %19 = arith.mulf %13, %16 : vector<16x16xf32>
    %cst_19 = arith.constant dense<0.000000e+00> : vector<16x16xf32>
    %20 = tpu.matmul %13, %18, %cst_19 {dimension_numbers = #tpu.dot_dimension_numbers<[1], [0], [0], [1], [0, 0, 1, 1], [], []>} : vector<16x16xf32>, vector<16x16xf32>, vector<16x16xf32> -> vector<16x16xf32>
    %21 = arith.mulf %20, %17 : vector<16x16xf32>
    %22 = arith.addf %19, %21 : vector<16x16xf32>
    %23 = arith.mulf %8, %16 : vector<16x16xf32>
    %cst_20 = arith.constant dense<0.000000e+00> : vector<16x16xf32>
    %24 = tpu.matmul %8, %18, %cst_20 {dimension_numbers = #tpu.dot_dimension_numbers<[1], [0], [0], [1], [0, 0, 1, 1], [], []>} : vector<16x16xf32>, vector<16x16xf32>, vector<16x16xf32> -> vector<16x16xf32>
    %25 = arith.mulf %24, %17 : vector<16x16xf32>
    %26 = arith.addf %23, %25 : vector<16x16xf32>
    %27 = vector.extract_strided_slice %22 {offsets = [0, 0], sizes = [16, 4], strides = [1, 1]} : vector<16x16xf32> to vector<16x4xf32>
    %28 = vector.extract_strided_slice %22 {offsets = [0, 4], sizes = [16, 4], strides = [1, 1]} : vector<16x16xf32> to vector<16x4xf32>
    %29 = vector.extract_strided_slice %22 {offsets = [0, 8], sizes = [16, 4], strides = [1, 1]} : vector<16x16xf32> to vector<16x4xf32>
    %30 = vector.extract_strided_slice %22 {offsets = [0, 12], sizes = [16, 4], strides = [1, 1]} : vector<16x16xf32> to vector<16x4xf32>
    %31 = vector.shape_cast %27 : vector<16x4xf32> to vector<1x16x4xf32>
    %32 = vector.shape_cast %28 : vector<16x4xf32> to vector<1x16x4xf32>
    %33 = vector.shape_cast %29 : vector<16x4xf32> to vector<1x16x4xf32>
    %34 = vector.shape_cast %30 : vector<16x4xf32> to vector<1x16x4xf32>
    %35 = tpu.concatenate %31, %32, %33, %34 in 0 : vector<1x16x4xf32>, vector<1x16x4xf32>, vector<1x16x4xf32>, vector<1x16x4xf32> -> vector<4x16x4xf32>
    %36 = arith.truncf %35 : vector<4x16x4xf32> to vector<4x16x4xbf16>
    %37 = vector.extract_strided_slice %26 {offsets = [0, 0], sizes = [16, 4], strides = [1, 1]} : vector<16x16xf32> to vector<16x4xf32>
    %38 = vector.extract_strided_slice %26 {offsets = [0, 4], sizes = [16, 4], strides = [1, 1]} : vector<16x16xf32> to vector<16x4xf32>
    %39 = vector.extract_strided_slice %26 {offsets = [0, 8], sizes = [16, 4], strides = [1, 1]} : vector<16x16xf32> to vector<16x4xf32>
    %40 = vector.extract_strided_slice %26 {offsets = [0, 12], sizes = [16, 4], strides = [1, 1]} : vector<16x16xf32> to vector<16x4xf32>
    %41 = vector.shape_cast %37 : vector<16x4xf32> to vector<1x16x4xf32>
    %42 = vector.shape_cast %38 : vector<16x4xf32> to vector<1x16x4xf32>
    %43 = vector.shape_cast %39 : vector<16x4xf32> to vector<1x16x4xf32>
    %44 = vector.shape_cast %40 : vector<16x4xf32> to vector<1x16x4xf32>
    %45 = tpu.concatenate %41, %42, %43, %44 in 0 : vector<1x16x4xf32>, vector<1x16x4xf32>, vector<1x16x4xf32>, vector<1x16x4xf32> -> vector<4x16x4xf32>
    %46 = arith.truncf %45 : vector<4x16x4xf32> to vector<4x16x4xbf16>
    %47 = vector.extract_strided_slice %15 {offsets = [0, 0], sizes = [16, 16], strides = [1, 1]} : vector<16x64xf32> to vector<16x16xf32>
    %48 = vector.extract_strided_slice %15 {offsets = [0, 16], sizes = [16, 16], strides = [1, 1]} : vector<16x64xf32> to vector<16x16xf32>
    %49 = vector.extract_strided_slice %15 {offsets = [0, 32], sizes = [16, 16], strides = [1, 1]} : vector<16x64xf32> to vector<16x16xf32>
    %50 = vector.extract_strided_slice %15 {offsets = [0, 48], sizes = [16, 16], strides = [1, 1]} : vector<16x64xf32> to vector<16x16xf32>
    %51 = vector.shape_cast %47 : vector<16x16xf32> to vector<1x16x16xf32>
    %52 = vector.shape_cast %48 : vector<16x16xf32> to vector<1x16x16xf32>
    %53 = vector.shape_cast %49 : vector<16x16xf32> to vector<1x16x16xf32>
    %54 = vector.shape_cast %50 : vector<16x16xf32> to vector<1x16x16xf32>
    %55 = tpu.concatenate %51, %52, %53, %54 in 0 : vector<1x16x16xf32>, vector<1x16x16xf32>, vector<1x16x16xf32>, vector<1x16x16xf32> -> vector<4x16x16xf32>
    %56 = arith.truncf %55 : vector<4x16x16xf32> to vector<4x16x16xbf16>
    "tpu.trace_start"() <{level = 10 : i32, message = "hqd,hkd->hqk"}> : () -> ()
    %cst_21 = arith.constant dense<0.000000e+00> : vector<4x16x16xf32>
    %57 = tpu.matmul %36, %46, %cst_21 {dimension_numbers = #tpu.dot_dimension_numbers<[2], [2], [1], [1], [0, 0, 0, 1, 1, 1], [0], [0]>} : vector<4x16x4xbf16>, vector<4x16x4xbf16>, vector<4x16x16xf32> -> vector<4x16x16xf32>
    "tpu.trace_stop"() : () -> ()
    %58 = tpu.iota {dimensions = array<i32: 2>} : vector<1x1x16xi32>
    %c12_i32 = arith.constant 12 : i32
    %59 = vector.broadcast %c12_i32 : i32 to vector<1x1x16xi32>
    %60 = arith.cmpi slt, %58, %59 : vector<1x1x16xi32>
    %cst_22 = arith.constant -1.000000e+30 : f32
    %61 = vector.shape_cast %60 : vector<1x1x16xi1> to vector<1x1x16xi1>
    %62 = vector.broadcast %61 : vector<1x1x16xi1> to vector<4x16x16xi1>
    %63 = vector.broadcast %cst_22 : f32 to vector<4x16x16xf32>
    %64 = arith.select %62, %57, %63 : vector<4x16x16xi1>, vector<4x16x16xf32>
    %cst_23 = arith.constant dense<0xFF800000> : vector<4x16xf32>
    %65 = vector.multi_reduction <maximumf>, %64, %cst_23 [2] : vector<4x16x16xf32> to vector<4x16xf32>
    %66 = vector.shape_cast %65 : vector<4x16xf32> to vector<4x16x1xf32>
    %67 = vector.broadcast %66 : vector<4x16x1xf32> to vector<4x16x16xf32>
    %68 = arith.subf %64, %67 : vector<4x16x16xf32>
    %69 = math.exp %68 : vector<4x16x16xf32>
    %cst_24 = arith.constant dense<0.000000e+00> : vector<4x16xf32>
    %70 = vector.multi_reduction <add>, %69, %cst_24 [2] : vector<4x16x16xf32> to vector<4x16xf32>
    %71 = vector.shape_cast %70 : vector<4x16xf32> to vector<4x16x1xf32>
    %72 = arith.truncf %69 : vector<4x16x16xf32> to vector<4x16x16xbf16>
    "tpu.trace_start"() <{level = 10 : i32, message = "hqk,hkd->hqd"}> : () -> ()
    %cst_25 = arith.constant dense<0.000000e+00> : vector<4x16x16xf32>
    %73 = tpu.matmul %72, %56, %cst_25 {dimension_numbers = #tpu.dot_dimension_numbers<[2], [1], [1], [2], [0, 0, 0, 1, 1, 2], [0], [0]>} : vector<4x16x16xbf16>, vector<4x16x16xbf16>, vector<4x16x16xf32> -> vector<4x16x16xf32>
    "tpu.trace_stop"() : () -> ()
    %74 = tpu.reciprocal %71 {approx = true} : vector<4x16x1xf32> -> vector<4x16x1xf32>
    %75 = vector.broadcast %74 : vector<4x16x1xf32> to vector<4x16x16xf32>
    %76 = arith.mulf %73, %75 : vector<4x16x16xf32>
    %cst_26 = arith.constant dense<0.000000e+00> : vector<16x16xf32>
    %77 = vector.multi_reduction <add>, %76, %cst_26 [0] : vector<4x16x16xf32> to vector<16x16xf32>
    %c0_27 = arith.constant 0 : index
    %c0_28 = arith.constant 0 : index
    %78 = vector.load %arg10[%c0_27, %c0_28] : memref<1x16xf32, #tpu.memory_space<vmem>>, vector<1x16xf32>
    %79 = vector.broadcast %78 : vector<1x16xf32> to vector<16x16xf32>
    %80 = arith.addf %77, %79 : vector<16x16xf32>
    %c0_29 = arith.constant 0 : index
    %c0_30 = arith.constant 0 : index
    %81 = vector.load %arg11[%c0_29, %c0_30] : memref<16x16xf32, #tpu.memory_space<vmem>>, vector<16x16xf32>
    tpu.vector_store %arg11[%c0_29, %c0_30], %80 {strides = array<i32>} : memref<16x16xf32, #tpu.memory_space<vmem>>, vector<16x16xf32>,
    return
  }
  func.func @transform_0(%arg0: i32) -> (i32, i32) {
    %c0_i32 = arith.constant 0 : i32
    %c0_i32_0 = arith.constant 0 : i32
    return %arg0, %c0_i32 : i32, i32
  }
  func.func @transform_1(%arg0: i32) -> (i32, i32) {
    %c0_i32 = arith.constant 0 : i32
    %c0_i32_0 = arith.constant 0 : i32
    %c0_i32_1 = arith.constant 0 : i32
    return %c0_i32, %c0_i32_0 : i32, i32
  }
  func.func @transform_2(%arg0: i32) -> (i32, i32) {
    %c0_i32 = arith.constant 0 : i32
    %c0_i32_0 = arith.constant 0 : i32
    %c0_i32_1 = arith.constant 0 : i32
    return %c0_i32, %c0_i32_0 : i32, i32
  }
  func.func @transform_3(%arg0: i32) -> (i32, i32) {
    %c0_i32 = arith.constant 0 : i32
    %c0_i32_0 = arith.constant 0 : i32
    %c0_i32_1 = arith.constant 0 : i32
    return %c0_i32, %c0_i32_0 : i32, i32
  }
  func.func @transform_4(%arg0: i32) -> (i32, i32) {
    %c0_i32 = arith.constant 0 : i32
    %c0_i32_0 = arith.constant 0 : i32
    %c0_i32_1 = arith.constant 0 : i32
    return %c0_i32, %c0_i32_0 : i32, i32
  }
  func.func @transform_5(%arg0: i32) -> (i32, i32) {
    %c0_i32 = arith.constant 0 : i32
    %c0_i32_0 = arith.constant 0 : i32
    %c0_i32_1 = arith.constant 0 : i32
    return %c0_i32, %c0_i32_0 : i32, i32
  }
  func.func @transform_6(%arg0: i32) -> (i32, i32) {
    %c0_i32 = arith.constant 0 : i32
    %c0_i32_0 = arith.constant 0 : i32
    %c0_i32_1 = arith.constant 0 : i32
    return %c0_i32, %c0_i32_0 : i32, i32
  }
  func.func @transform_7(%arg0: i32) -> (i32, i32) {
    %c0_i32 = arith.constant 0 : i32
    %c0_i32_0 = arith.constant 0 : i32
    %c0_i32_1 = arith.constant 0 : i32
    return %c0_i32, %c0_i32_0 : i32, i32
  }
  func.func @transform_8(%arg0: i32) -> (i32, i32) {
    %c0_i32 = arith.constant 0 : i32
    %c0_i32_0 = arith.constant 0 : i32
    %c0_i32_1 = arith.constant 0 : i32
    return %c0_i32, %c0_i32_0 : i32, i32
  }
  func.func @transform_9(%arg0: i32) -> (i32, i32) {
    %c0_i32 = arith.constant 0 : i32
    %c0_i32_0 = arith.constant 0 : i32
    %c0_i32_1 = arith.constant 0 : i32
    return %c0_i32, %c0_i32_0 : i32, i32
  }
  func.func @transform_10(%arg0: i32) -> (i32, i32) {
    %c0_i32 = arith.constant 0 : i32
    %c0_i32_0 = arith.constant 0 : i32
    return %arg0, %c0_i32 : i32, i32
  }
}

</mosaic_0001>

<llo_original>
// kernel: tpu_custom_call.1
$region0: #{tpu_custom_call.1}
  #allocation0 [shape = 'u32[]', space=smem, size = 0x4, offset = 0x4, fixed_abs, tag = 'smem constant byte address 0x4 - core index']
  #allocation1 [shape = 'u32[72,128]{1,0:T(1,128)}', space=vmem, size = 0x9000, scoped, tag = 'internal scratch']
  %s0 = inlined_call_operand.vmem [shape: f32[32,16], index: 0, kind: input, shape index: {}]
  %s1 = inlined_call_operand.vmem [shape: f32[16,16], index: 1, kind: input, shape index: {}]
  %s2 = inlined_call_operand.vmem [shape: f32[16,16], index: 2, kind: input, shape index: {}]
  %s3 = inlined_call_operand.vmem [shape: f32[16,16], index: 3, kind: input, shape index: {}]
  %s4 = inlined_call_operand.hbm [shape: f32[16,28], index: 4, kind: input, shape index: {}]
  %s5 = inlined_call_operand.vmem [shape: f32[1,28], index: 5, kind: input, shape index: {}]
  %s6 = inlined_call_operand.hbm [shape: f32[6,16], index: 6, kind: input, shape index: {}]
  %s7 = inlined_call_operand.vmem [shape: f32[1,16], index: 7, kind: input, shape index: {}]
  %s8 = inlined_call_operand.hbm [shape: f32[6,64], index: 8, kind: input, shape index: {}]
  %s9 = inlined_call_operand.vmem [shape: f32[1,16], index: 9, kind: input, shape index: {}]
  %s10 = inlined_call_operand.vmem [shape: f32[32,16], index: 10, kind: output, shape index: {}]
  %s11 = sld [smem:[#allocation0]]
  $region85: #{tpu_custom_call.1} parent=0
    _
  %s13 = ssub.s32 1, %s11
  %s14 = scalar_select 0, %s13, %s11
  $region1: #{tpu_custom_call.1} parent=0
    #allocation2 [shape = 'u8[8192]{0}', space=vmem, size = 0x2000, scoped, tag = 'input window, operand 4, single buffered']
    #allocation3 [shape = 's32[2]{0}', space=sflag, size = 0x8, scoped, tag = 'scoped memory for tpu_custom_call.1']
    #allocation4 [shape = 'u8[4096]{0}', space=vmem, size = 0x1000, scoped, tag = 'input window, operand 6, single buffered']
    #allocation5 [shape = 's32[1]{0}', space=sflag, size = 0x4, scoped, tag = 'scoped memory for tpu_custom_call.1']
    #allocation6 [shape = 'u8[4096]{0}', space=vmem, size = 0x1000, scoped, tag = 'input window, operand 8, single buffered']
    %15 = vsyncpa [#allocation3], 0
    %16 = vsyncpa [#allocation5], 0
    loop: start=0, step=1, limit=4
    $region2: #{tpu_custom_call.1} parent=1 // loop_pre_header
      _
    $region3: #{tpu_custom_call.1} parent=1 // loop_header
      %s18 = sphi 0, %s22
      %p19 = scmp.ge.s32.totalorder %s18, 4
      %s28 = sphi 0, %s30
      %s31 = sphi 0, %s28
      %s32 = sphi 0, %s31
      %s48 = sphi 0, %s32
      %s52 = sphi 0, %s52
      %s54 = sphi 0, %s52
      %s55 = sphi 0, %s54
      %s69 = sphi 0, %s55
      %s73 = sphi 0, %s73
      %s75 = sphi 0, %s73
      %s76 = sphi 0, %s75
      %s90 = sphi 0, %s76
      %s94 = sphi 0, %s94
      %s96 = sphi 0, %s94
      %s97 = sphi 0, %s96
      %s111 = sphi 0, %s97
      %s115 = sphi 0, %s115
      %s117 = sphi 0, %s115
      %s118 = sphi 0, %s117
      %s132 = sphi 0, %s118
      %s136 = sphi 0, %s136
      %s138 = sphi 0, %s136
      %s139 = sphi 0, %s138
      %s153 = sphi 0, %s139
      %s157 = sphi 0, %s157
      %s159 = sphi 0, %s157
      %s160 = sphi 0, %s159
      %s174 = sphi 0, %s160
      %s178 = sphi 0, %s178
      %s180 = sphi 0, %s178
      %s181 = sphi 0, %s180
      %s195 = sphi 0, %s181
      %s199 = sphi 0, %s199
      %s201 = sphi 0, %s199
      %s202 = sphi 0, %s201
      %s216 = sphi 0, %s202
      %s220 = sphi 0, %s220
      %s222 = sphi 0, %s220
      %s223 = sphi 0, %s222
      %s237 = sphi 0, %s223
      %s243 = sphi 0, %s245
      %s246 = sphi 0, %s243
      %s247 = sphi 0, %s246
      %s263 = sphi 0, %s247
    $region4: #{tpu_custom_call.1} parent=1 // loop_header_branch
      %21 = sbr.rel (%p19) target = $region8
    $region5: #{tpu_custom_call.1} parent=1 // loop_body
      %s23 = ssub.s32 %s18, 1
      %s24 = ssub.s32 %s18, 2
      %s25 = sadd.s32 %s18, 1
      %s26 = ssub.s32 %s18, %s25
      %p27 = scmp.eq.s32.totalorder %s26, 0
      %s29 = sadd.s32 %s28, 1
      %s30 = scalar_select %p27, %s28, %s29
      %p33 = pneg %p27
      %p34 = scmp.eq.s32.totalorder %s18, 1
      %p35 = por %p33, %p34
      %p36 = scmp.ne.s32.totalorder %s28, %s31
      %p37 = scmp.eq.s32.totalorder %s18, 0
      %p38 = por %p36, %p37
      %p39 = scmp.ne.s32.totalorder %s28, %s31
      %p40 = scmp.eq.s32.totalorder %s23, 1
      %p41 = por %p39, %p40
      %p42 = scmp.ne.s32.totalorder %s31, %s32
      %p43 = scmp.eq.s32.totalorder %s23, 0
      %p44 = por %p42, %p43
      %p45 = scmp.ne.s32.totalorder %s31, %s32
      %p46 = scmp.eq.s32.totalorder %s24, 1
      %p47 = por %p45, %p46
      %p49 = scmp.ne.s32.totalorder %s32, %s48
      %p50 = scmp.eq.s32.totalorder %s24, 0
      %p51 = por %p49, %p50
      %s53 = sadd.s32 %s52, 1
      %p56 = scmp.eq.s32.totalorder %s18, 1
      %p57 = scmp.ne.s32.totalorder %s52, %s54
      %p58 = scmp.eq.s32.totalorder %s18, 0
      %p59 = por %p57, %p58
      %p60 = scmp.ne.s32.totalorder %s52, %s54
      %p61 = scmp.eq.s32.totalorder %s23, 1
      %p62 = por %p60, %p61
      %p63 = scmp.ne.s32.totalorder %s54, %s55
      %p64 = scmp.eq.s32.totalorder %s23, 0
      %p65 = por %p63, %p64
      %p66 = scmp.ne.s32.totalorder %s54, %s55
      %p67 = scmp.eq.s32.totalorder %s24, 1
      %p68 = por %p66, %p67
      %p70 = scmp.ne.s32.totalorder %s55, %s69
      %p71 = scmp.eq.s32.totalorder %s24, 0
      %p72 = por %p70, %p71
      %s74 = sadd.s32 %s73, 1
      %p77 = scmp.eq.s32.totalorder %s18, 1
      %p78 = scmp.ne.s32.totalorder %s73, %s75
      %p79 = scmp.eq.s32.totalorder %s18, 0
      %p80 = por %p78, %p79
      %p81 = scmp.ne.s32.totalorder %s73, %s75
      %p82 = scmp.eq.s32.totalorder %s23, 1
      %p83 = por %p81, %p82
      %p84 = scmp.ne.s32.totalorder %s75, %s76
      %p85 = scmp.eq.s32.totalorder %s23, 0
      %p86 = por %p84, %p85
      %p87 = scmp.ne.s32.totalorder %s75, %s76
      %p88 = scmp.eq.s32.totalorder %s24, 1
      %p89 = por %p87, %p88
      %p91 = scmp.ne.s32.totalorder %s76, %s90
      %p92 = scmp.eq.s32.totalorder %s24, 0
      %p93 = por %p91, %p92
      %s95 = sadd.s32 %s94, 1
      %p98 = scmp.eq.s32.totalorder %s18, 1
      %p99 = scmp.ne.s32.totalorder %s94, %s96
      %p100 = scmp.eq.s32.totalorder %s18, 0
      %p101 = por %p99, %p100
      %p102 = scmp.ne.s32.totalorder %s94, %s96
      %p103 = scmp.eq.s32.totalorder %s23, 1
      %p104 = por %p102, %p103
      %p105 = scmp.ne.s32.totalorder %s96, %s97
      %p106 = scmp.eq.s32.totalorder %s23, 0
      %p107 = por %p105, %p106
      %p108 = scmp.ne.s32.totalorder %s96, %s97
      %p109 = scmp.eq.s32.totalorder %s24, 1
      %p110 = por %p108, %p109
      %p112 = scmp.ne.s32.totalorder %s97, %s111
      %p113 = scmp.eq.s32.totalorder %s24, 0
      %p114 = por %p112, %p113
      %s116 = sadd.s32 %s115, 1
      %p119 = scmp.eq.s32.totalorder %s18, 1
      %p120 = scmp.ne.s32.totalorder %s115, %s117
      %p121 = scmp.eq.s32.totalorder %s18, 0
      %p122 = por %p120, %p121
      %p123 = scmp.ne.s32.totalorder %s115, %s117
      %p124 = scmp.eq.s32.totalorder %s23, 1
      %p125 = por %p123, %p124
      %p126 = scmp.ne.s32.totalorder %s117, %s118
      %p127 = scmp.eq.s32.totalorder %s23, 0
      %p128 = por %p126, %p127
      %p129 = scmp.ne.s32.totalorder %s117, %s118
      %p130 = scmp.eq.s32.totalorder %s24, 1
      %p131 = por %p129, %p130
      %p133 = scmp.ne.s32.totalorder %s118, %s132
      %p134 = scmp.eq.s32.totalorder %s24, 0
      %p135 = por %p133, %p134
      %s137 = sadd.s32 %s136, 1
      %p140 = scmp.eq.s32.totalorder %s18, 1
      %p141 = scmp.ne.s32.totalorder %s136, %s138
      %p142 = scmp.eq.s32.totalorder %s18, 0
      %p143 = por %p141, %p142
      %p144 = scmp.ne.s32.totalorder %s136, %s138
      %p145 = scmp.eq.s32.totalorder %s23, 1
      %p146 = por %p144, %p145
      %p147 = scmp.ne.s32.totalorder %s138, %s139
      %p148 = scmp.eq.s32.totalorder %s23, 0
      %p149 = por %p147, %p148
      %p150 = scmp.ne.s32.totalorder %s138, %s139
      %p151 = scmp.eq.s32.totalorder %s24, 1
      %p152 = por %p150, %p151
      %p154 = scmp.ne.s32.totalorder %s139, %s153
      %p155 = scmp.eq.s32.totalorder %s24, 0
      %p156 = por %p154, %p155
      %s158 = sadd.s32 %s157, 1
      %p161 = scmp.eq.s32.totalorder %s18, 1
      %p162 = scmp.ne.s32.totalorder %s157, %s159
      %p163 = scmp.eq.s32.totalorder %s18, 0
      %p164 = por %p162, %p163
      %p165 = scmp.ne.s32.totalorder %s157, %s159
      %p166 = scmp.eq.s32.totalorder %s23, 1
      %p167 = por %p165, %p166
      %p168 = scmp.ne.s32.totalorder %s159, %s160
      %p169 = scmp.eq.s32.totalorder %s23, 0
      %p170 = por %p168, %p169
      %p171 = scmp.ne.s32.totalorder %s159, %s160
      %p172 = scmp.eq.s32.totalorder %s24, 1
      %p173 = por %p171, %p172
      %p175 = scmp.ne.s32.totalorder %s160, %s174
      %p176 = scmp.eq.s32.totalorder %s24, 0
      %p177 = por %p175, %p176
      %s179 = sadd.s32 %s178, 1
      %p182 = scmp.eq.s32.totalorder %s18, 1
      %p183 = scmp.ne.s32.totalorder %s178, %s180
      %p184 = scmp.eq.s32.totalorder %s18, 0
      %p185 = por %p183, %p184
      %p186 = scmp.ne.s32.totalorder %s178, %s180
      %p187 = scmp.eq.s32.totalorder %s23, 1
      %p188 = por %p186, %p187
      %p189 = scmp.ne.s32.totalorder %s180, %s181
      %p190 = scmp.eq.s32.totalorder %s23, 0
      %p191 = por %p189, %p190
      %p192 = scmp.ne.s32.totalorder %s180, %s181
      %p193 = scmp.eq.s32.totalorder %s24, 1
      %p194 = por %p192, %p193
      %p196 = scmp.ne.s32.totalorder %s181, %s195
      %p197 = scmp.eq.s32.totalorder %s24, 0
      %p198 = por %p196, %p197
      %s200 = sadd.s32 %s199, 1
      %p203 = scmp.eq.s32.totalorder %s18, 1
      %p204 = scmp.ne.s32.totalorder %s199, %s201
      %p205 = scmp.eq.s32.totalorder %s18, 0
      %p206 = por %p204, %p205
      %p207 = scmp.ne.s32.totalorder %s199, %s201
      %p208 = scmp.eq.s32.totalorder %s23, 1
      %p209 = por %p207, %p208
      %p210 = scmp.ne.s32.totalorder %s201, %s202
      %p211 = scmp.eq.s32.totalorder %s23, 0
      %p212 = por %p210, %p211
      %p213 = scmp.ne.s32.totalorder %s201, %s202
      %p214 = scmp.eq.s32.totalorder %s24, 1
      %p215 = por %p213, %p214
      %p217 = scmp.ne.s32.totalorder %s202, %s216
      %p218 = scmp.eq.s32.totalorder %s24, 0
      %p219 = por %p217, %p218
      %s221 = sadd.s32 %s220, 1
      %p224 = scmp.eq.s32.totalorder %s18, 1
      %p225 = scmp.ne.s32.totalorder %s220, %s222
      %p226 = scmp.eq.s32.totalorder %s18, 0
      %p227 = por %p225, %p226
      %p228 = scmp.ne.s32.totalorder %s220, %s222
      %p229 = scmp.eq.s32.totalorder %s23, 1
      %p230 = por %p228, %p229
      %p231 = scmp.ne.s32.totalorder %s222, %s223
      %p232 = scmp.eq.s32.totalorder %s23, 0
      %p233 = por %p231, %p232
      %p234 = scmp.ne.s32.totalorder %s222, %s223
      %p235 = scmp.eq.s32.totalorder %s24, 1
      %p236 = por %p234, %p235
      %p238 = scmp.ne.s32.totalorder %s223, %s237
      %p239 = scmp.eq.s32.totalorder %s24, 0
      %p240 = por %p238, %p239
      %s241 = ssub.s32 %s18, %s25
      %p242 = scmp.eq.s32.totalorder %s241, 0
      %s244 = sadd.s32 %s243, 1
      %s245 = scalar_select %p242, %s243, %s244
      %p248 = pneg %p242
      %p249 = scmp.eq.s32.totalorder %s18, 1
      %p250 = por %p248, %p249
      %p251 = scmp.ne.s32.totalorder %s243, %s246
      %p252 = scmp.eq.s32.totalorder %s18, 0
      %p253 = por %p251, %p252
      %p254 = scmp.ne.s32.totalorder %s243, %s246
      %p255 = scmp.eq.s32.totalorder %s23, 1
      %p256 = por %p254, %p255
      %p257 = scmp.ne.s32.totalorder %s246, %s247
      %p258 = scmp.eq.s32.totalorder %s23, 0
      %p259 = por %p257, %p258
      %p260 = scmp.ne.s32.totalorder %s246, %s247
      %p261 = scmp.eq.s32.totalorder %s24, 1
      %p262 = por %p260, %p261
      %p264 = scmp.ne.s32.totalorder %s247, %s263
      %p265 = scmp.eq.s32.totalorder %s24, 0
      %p266 = por %p264, %p265
      %p267 = scmp.le.s32.totalorder 1, %s18
      %p268 = scmp.lt.s32.totalorder %s18, 3
      %p269 = pnand %p267, %p268
      %p270 = pneg %p269
      // Predicated region
      $region9: #{tpu_custom_call.1} parent=5 // pred_check
        _
      $region10: #{tpu_custom_call.1} parent=5 // pred_check_branch
        %272 = sbr.rel (%p269) target = $region12
      $region11: #{tpu_custom_call.1} parent=5 // pred_region
        %s273 = ssub.s32 %s18, 1
        // Predicated region
        $region13: #{tpu_custom_call.1} parent=11 // pred_check
          %p274 = pneg %p65
        $region14: #{tpu_custom_call.1} parent=11 // pred_check_branch
          %276 = sbr.rel (%p274) target = $region16
        $region15: #{tpu_custom_call.1} parent=11 // pred_region
          _
        $region16: #{tpu_custom_call.1} parent=11 // pred_fallthru
          _
        // Predicated region
        $region17: #{tpu_custom_call.1} parent=11 // pred_check
          %p277 = pneg %p86
        $region18: #{tpu_custom_call.1} parent=11 // pred_check_branch
          %279 = sbr.rel (%p277) target = $region20
        $region19: #{tpu_custom_call.1} parent=11 // pred_region
          _
        $region20: #{tpu_custom_call.1} parent=11 // pred_fallthru
          _
        // Predicated region
        $region21: #{tpu_custom_call.1} parent=11 // pred_check
          %p280 = pneg %p107
        $region22: #{tpu_custom_call.1} parent=11 // pred_check_branch
          %282 = sbr.rel (%p280) target = $region24
        $region23: #{tpu_custom_call.1} parent=11 // pred_region
          _
        $region24: #{tpu_custom_call.1} parent=11 // pred_fallthru
          _
        // Predicated region
        $region25: #{tpu_custom_call.1} parent=11 // pred_check
          %p283 = pneg %p128
        $region26: #{tpu_custom_call.1} parent=11 // pred_check_branch
          %285 = sbr.rel (%p283) target = $region28
        $region27: #{tpu_custom_call.1} parent=11 // pred_region
          %287 = vsyncadd [#allocation3], 0
          %s288 = sshll.u32 %s4, 4
          %s289 = int_to_ptr.hbm [resolvable:$true] %s288
          %s290 = sshll.u32 [#allocation2], 4
          %s291 = int_to_ptr.vmem [resolvable:$true] %s290
          %296 = dma.hbm_to_vmem [thread:$0]  %s289, 256, %s291, [#allocation3], 128, 128, 8
        $region28: #{tpu_custom_call.1} parent=11 // pred_fallthru
          _
        // Predicated region
        $region29: #{tpu_custom_call.1} parent=11 // pred_check
          %p297 = pneg %p149
        $region30: #{tpu_custom_call.1} parent=11 // pred_check_branch
          %299 = sbr.rel (%p297) target = $region32
        $region31: #{tpu_custom_call.1} parent=11 // pred_region
          _
        $region32: #{tpu_custom_call.1} parent=11 // pred_fallthru
          _
        // Predicated region
        $region33: #{tpu_custom_call.1} parent=11 // pred_check
          %p300 = pneg %p170
        $region34: #{tpu_custom_call.1} parent=11 // pred_check_branch
          %302 = sbr.rel (%p300) target = $region36
        $region35: #{tpu_custom_call.1} parent=11 // pred_region
          %304 = vsyncadd [#allocation5], 0
          %s306 = sshll.u32 %s6, 4
          %s307 = int_to_ptr.hbm [resolvable:$true] %s306
          %s308 = sshll.u32 [#allocation4], 4
          %s309 = int_to_ptr.vmem [resolvable:$true] %s308
          %311 = dma.hbm_to_vmem [thread:$0]  %s307, 128, %s309, [#allocation5]
        $region36: #{tpu_custom_call.1} parent=11 // pred_fallthru
          _
        // Predicated region
        $region37: #{tpu_custom_call.1} parent=11 // pred_check
          %p312 = pneg %p191
        $region38: #{tpu_custom_call.1} parent=11 // pred_check_branch
          %314 = sbr.rel (%p312) target = $region40
        $region39: #{tpu_custom_call.1} parent=11 // pred_region
          _
        $region40: #{tpu_custom_call.1} parent=11 // pred_fallthru
          _
        // Predicated region
        $region41: #{tpu_custom_call.1} parent=11 // pred_check
          %p315 = pneg %p212
        $region42: #{tpu_custom_call.1} parent=11 // pred_check_branch
          %317 = sbr.rel (%p315) target = $region44
        $region43: #{tpu_custom_call.1} parent=11 // pred_region
          %319 = vsyncadd [#allocation5], 0
          %s321 = sshll.u32 %s8, 4
          %s322 = int_to_ptr.hbm [resolvable:$true] %s321
          %s323 = sshll.u32 [#allocation6], 4
          %s324 = int_to_ptr.vmem [resolvable:$true] %s323
          %326 = dma.hbm_to_vmem [thread:$0]  %s322, 128, %s324, [#allocation5]
        $region44: #{tpu_custom_call.1} parent=11 // pred_fallthru
          _
        // Predicated region
        $region45: #{tpu_custom_call.1} parent=11 // pred_check
          %p327 = pneg %p233
        $region46: #{tpu_custom_call.1} parent=11 // pred_check_branch
          %329 = sbr.rel (%p327) target = $region48
        $region47: #{tpu_custom_call.1} parent=11 // pred_region
          _
        $region48: #{tpu_custom_call.1} parent=11 // pred_fallthru
          _
      $region12: #{tpu_custom_call.1} parent=5 // pred_fallthru
        _
      %p330 = scmp.lt.s32.totalorder %s18, 2
      // Predicated region
      $region49: #{tpu_custom_call.1} parent=5 // pred_check
        %p331 = pneg %p330
      $region50: #{tpu_custom_call.1} parent=5 // pred_check_branch
        %333 = sbr.rel (%p331) target = $region52
      $region51: #{tpu_custom_call.1} parent=5 // pred_region
        // Predicated region
        $region53: #{tpu_custom_call.1} parent=51 // pred_check
          %p334 = pneg %p38
        $region54: #{tpu_custom_call.1} parent=51 // pred_check_branch
          %336 = sbr.rel (%p334) target = $region56
        $region55: #{tpu_custom_call.1} parent=51 // pred_region
          %s337 = smul.u32 2, %s18
          %p338 = scmp.lt.s32.totalorder %s337, 3
          %s339 = scalar_select %p338, %s337, 3
          %s340 = smul.addr %s339, 8
          %s341 = scalar_lea.vmem %s0, %s340
          %s342 = smul.u32 2, %s18
        $region56: #{tpu_custom_call.1} parent=51 // pred_fallthru
          _
      $region52: #{tpu_custom_call.1} parent=5 // pred_fallthru
        _
      %p343 = scmp.le.s32.totalorder 1, %s18
      %p344 = scmp.lt.s32.totalorder %s18, 3
      %p345 = pnand %p343, %p344
      %p346 = pneg %p345
      // Predicated region
      $region57: #{tpu_custom_call.1} parent=5 // pred_check
        _
      $region58: #{tpu_custom_call.1} parent=5 // pred_check_branch
        %348 = sbr.rel (%p345) target = $region60
      $region59: #{tpu_custom_call.1} parent=5 // pred_region
        %s349 = ssub.s32 %s18, 1
        // Predicated region
        $region61: #{tpu_custom_call.1} parent=59 // pred_check
          %p350 = pneg %p128
        $region62: #{tpu_custom_call.1} parent=59 // pred_check_branch
          %352 = sbr.rel (%p350) target = $region64
        $region63: #{tpu_custom_call.1} parent=59 // pred_region
          %354 = dma.done [#allocation3], 256
        $region64: #{tpu_custom_call.1} parent=59 // pred_fallthru
          _
        // Predicated region
        $region65: #{tpu_custom_call.1} parent=59 // pred_check
          %p355 = pneg %p170
        $region66: #{tpu_custom_call.1} parent=59 // pred_check_branch
          %357 = sbr.rel (%p355) target = $region68
        $region67: #{tpu_custom_call.1} parent=59 // pred_region
          %359 = dma.done [#allocation5], 128
        $region68: #{tpu_custom_call.1} parent=59 // pred_fallthru
          _
        // Predicated region
        $region69: #{tpu_custom_call.1} parent=59 // pred_check
          %p360 = pneg %p212
        $region70: #{tpu_custom_call.1} parent=59 // pred_check_branch
          %362 = sbr.rel (%p360) target = $region72
        $region71: #{tpu_custom_call.1} parent=59 // pred_region
          %364 = dma.done [#allocation5], 128
        $region72: #{tpu_custom_call.1} parent=59 // pred_fallthru
          _
        %s365 = smul.u32 2, %s23
        %p366 = scmp.lt.s32.totalorder %s365, 3
        %s367 = scalar_select %p366, %s365, 3
        %s368 = smul.addr %s367, 8
        %s369 = scalar_lea.vmem %s0, %s368
        %p370 = pneg %p44
        %p371 = pneg %p41
        %p372 = pneg %p65
        %p373 = pneg %p62
        %p374 = pneg %p86
        %p375 = pneg %p83
        %p376 = pneg %p107
        %p377 = pneg %p104
        %p378 = pneg %p128
        %p379 = pneg %p125
        %p380 = pneg %p149
        %p381 = pneg %p146
        %p382 = pneg %p170
        %p383 = pneg %p167
        %p384 = pneg %p191
        %p385 = pneg %p188
        %p386 = pneg %p212
        %p387 = pneg %p209
        %p388 = pneg %p233
        %p389 = pneg %p230
        %p390 = pneg %p259
        %p391 = pneg %p256
        %s392 = smul.u32 2, %s23
        %p393 = scmp.lt.s32.totalorder %s392, 3
        %s394 = scalar_select %p393, %s392, 3
        %s395 = smul.addr %s394, 8
        %s396 = scalar_lea.vmem %s10, %s395
        %s397 = smul.u32 2, %s23
        %p398 = scmp.lt.s32.totalorder %s397, 3
        %s399 = scalar_select %p398, %s397, 3
        %s400 = smul.addr %s399, 8
        %s401 = scalar_lea.vmem %s0, %s400
        %s402 = smul.u32 2, %s23
        %s403 = smul.u32 2, %s23
        %p404 = scmp.lt.s32.totalorder %s403, 3
        %s405 = scalar_select %p404, %s403, 3
        %s406 = smul.addr %s405, 8
        %s407 = scalar_lea.vmem %s10, %s406
        %s408 = smul.u32 2, %s23
        %v410 = vld [vmem:[%s401] sm:$0xff]
        %v411 = vld [vmem:[%s401 + $0x8] sm:$0xff]
        %v412 = vld [vmem:[#allocation2] sm:$0xff]
        %v413 = vld [vmem:[#allocation2 + $0x8] sm:$0xff]
        %v414 = vld [vmem:[%s5] sm:$0x1]
        %v416 = vperm.slane %v414, 0
        %vm418 = vcmask 130048
        %v420 = vsel %vm418, %v410, 0
        %v423 = vsel %vm418, %v411, 0
        %425 = vmatpush.msra.mxu0 0.0
        %426 = vmatpush.msra.mxu0 0.0
        %427 = vmatpush.msra.mxu0 0.0
        %428 = vmatpush.msra.mxu0 0.0
        %429 = vmatpush.msra.mxu0 0.0
        %430 = vmatpush.msra.mxu0 0.0
        %431 = vmatpush.msra.mxu0 0.0
        %432 = vmatpush.msra.mxu0 0.0
        %433 = vmatpush.msra.mxu0 0.0
        %434 = vmatpush.msra.mxu0 0.0
        %435 = vmatpush.msra.mxu0 0.0
        %436 = vmatpush.msra.mxu0 0.0
        %437 = vmatpush.msra.mxu0 0.0
        %438 = vmatpush.msra.mxu0 0.0
        %439 = vmatpush.msra.mxu0 %v413
        %440 = vmatpush.msra.mxu0 %v412
        %441 = vmatmul.f32.gmra.mxu0 %v420
        %v442 = vpop.f32.mrf.mxu0
        %v443 = vadd.f32 %v416, %v442
        %444 = vmatmul.f32.gmra.mxu0 %v423
        %v445 = vpop.f32.mrf.mxu0
        %v446 = vadd.f32 %v416, %v445
        %447 = vdwg.mxu0
        %v448 = vld [vmem:[#allocation4] sm:$0x3f]
        %v449 = vld [vmem:[%s7] sm:$0x1]
        %v451 = vperm.slane %v449, 0
        %455 = vrot.lane.b32.xlu0 %v443, 122
        %v456 = vpop.permute.xlu0 %455
        %457 = vrot.lane.b32.xlu0 %v446, 122
        %v458 = vpop.permute.xlu0 %457
        %vm459 = vcmask 48128
        %v460 = vsel %vm459, %v456, 0
        %v462 = vsel %vm459, %v458, 0
        %vm464 = vcmask 1045504
        %v466 = vsel %vm464, %v448, 0
        %468 = vmatpush.msra.mxu0 0.0
        %469 = vmatpush.msra.mxu0 0.0
        %470 = vmatpush.msra.mxu0 0.0
        %471 = vmatpush.msra.mxu0 0.0
        %472 = vmatpush.msra.mxu0 0.0
        %473 = vmatpush.msra.mxu0 0.0
        %474 = vmatpush.msra.mxu0 0.0
        %475 = vmatpush.msra.mxu0 0.0
        %476 = vmatpush.msra.mxu0 0.0
        %477 = vmatpush.msra.mxu0 0.0
        %478 = vmatpush.msra.mxu0 0.0
        %479 = vmatpush.msra.mxu0 0.0
        %480 = vmatpush.msra.mxu0 0.0
        %481 = vmatpush.msra.mxu0 0.0
        %482 = vmatpush.msra.mxu0 0.0
        %483 = vmatpush.msra.mxu0 %v466
        %484 = vmatmul.f32.gmra.mxu0 %v460
        %v485 = vpop.f32.mrf.mxu0
        %v486 = vadd.f32 %v451, %v485
        %487 = vmatmul.f32.gmra.mxu0 %v462
        %v488 = vpop.f32.mrf.mxu0
        %v489 = vadd.f32 %v451, %v488
        %490 = vdwg.mxu0
        %v491 = vld [vmem:[#allocation6] sm:$0x3f]
        %v492 = vsel %vm459, %v443, 0
        %v494 = vsel %vm459, %v446, 0
        %v497 = vsel %vm464, %v491, 0
        %499 = vmatpush.msra.mxu0 0.0
        %500 = vmatpush.msra.mxu0 0.0
        %501 = vmatpush.msra.mxu0 0.0
        %502 = vmatpush.msra.mxu0 0.0
        %503 = vmatpush.msra.mxu0 0.0
        %504 = vmatpush.msra.mxu0 0.0
        %505 = vmatpush.msra.mxu0 0.0
        %506 = vmatpush.msra.mxu0 0.0
        %507 = vmatpush.msra.mxu0 0.0
        %508 = vmatpush.msra.mxu0 0.0
        %509 = vmatpush.msra.mxu0 0.0
        %510 = vmatpush.msra.mxu0 0.0
        %511 = vmatpush.msra.mxu0 0.0
        %512 = vmatpush.msra.mxu0 0.0
        %513 = vmatpush.msra.mxu0 0.0
        %514 = vmatpush.msra.mxu0 %v497
        %515 = vmatmul.f32.gmra.mxu0 %v492
        %v516 = vpop.f32.mrf.mxu0
        %v517 = vadd.f32 0.0, %v516
        %518 = vmatmul.f32.gmra.mxu0 %v494
        %v519 = vpop.f32.mrf.mxu0
        %v520 = vadd.f32 0.0, %v519
        %521 = vdwg.mxu0
        %v522 = vld [vmem:[%s1] sm:$0xff]
        %v523 = vld [vmem:[%s1 + $0x8] sm:$0xff]
        %v524 = vld [vmem:[%s2] sm:$0xff]
        %v525 = vld [vmem:[%s2 + $0x8] sm:$0xff]
        %v526 = vld [vmem:[%s3] sm:$0xff]
        %v527 = vld [vmem:[%s3 + $0x8] sm:$0xff]
        %v528 = vmul.f32 %v486, %v522
        %v529 = vmul.f32 %v489, %v523
        %v531 = vsel %vm418, %v486, 0
        %v534 = vsel %vm418, %v489, 0
        %536 = vmatpush.msra.mxu0 0.0
        %537 = vmatpush.msra.mxu0 0.0
        %538 = vmatpush.msra.mxu0 0.0
        %539 = vmatpush.msra.mxu0 0.0
        %540 = vmatpush.msra.mxu0 0.0
        %541 = vmatpush.msra.mxu0 0.0
        %542 = vmatpush.msra.mxu0 0.0
        %543 = vmatpush.msra.mxu0 0.0
        %544 = vmatpush.msra.mxu0 0.0
        %545 = vmatpush.msra.mxu0 0.0
        %546 = vmatpush.msra.mxu0 0.0
        %547 = vmatpush.msra.mxu0 0.0
        %548 = vmatpush.msra.mxu0 0.0
        %549 = vmatpush.msra.mxu0 0.0
        %550 = vmatpush.msra.mxu0 %v527
        %551 = vmatpush.msra.mxu0 %v526
        %552 = vmatmul.f32.gmra.mxu0 %v531
        %v553 = vpop.f32.mrf.mxu0
        %v554 = vadd.f32 0.0, %v553
        %555 = vmatmul.f32.gmra.mxu0 %v534
        %v556 = vpop.f32.mrf.mxu0
        %v557 = vadd.f32 0.0, %v556
        %558 = vdwg.mxu0
        %v559 = vmul.f32 %v554, %v524
        %v560 = vmul.f32 %v557, %v525
        %v561 = vadd.f32 %v528, %v559
        %v562 = vadd.f32 %v529, %v560
        %565 = vrot.lane.b32.xlu0 %v522, 12
        %v566 = vpop.permute.xlu0 %565
        %567 = vrot.lane.b32.xlu0 %v523, 12
        %v568 = vpop.permute.xlu0 %567
        %v571 = vmul.f32 %v443, %v566
        %v572 = vmul.f32 %v446, %v568
        %573 = vrot.lane.b32.xlu0 %v443, 116
        %v574 = vpop.permute.xlu0 %573
        %575 = vrot.lane.b32.xlu0 %v446, 116
        %v576 = vpop.permute.xlu0 %575
        %v577 = vsel %vm418, %v574, 0
        %v579 = vsel %vm418, %v576, 0
        %581 = vmatpush.msra.mxu0 0.0
        %582 = vmatpush.msra.mxu0 0.0
        %583 = vmatpush.msra.mxu0 0.0
        %584 = vmatpush.msra.mxu0 0.0
        %585 = vmatpush.msra.mxu0 0.0
        %586 = vmatpush.msra.mxu0 0.0
        %587 = vmatpush.msra.mxu0 0.0
        %588 = vmatpush.msra.mxu0 0.0
        %589 = vmatpush.msra.mxu0 0.0
        %590 = vmatpush.msra.mxu0 0.0
        %591 = vmatpush.msra.mxu0 0.0
        %592 = vmatpush.msra.mxu0 0.0
        %593 = vmatpush.msra.mxu0 0.0
        %594 = vmatpush.msra.mxu0 0.0
        %595 = vmatpush.msra.mxu0 %v527
        %596 = vmatpush.msra.mxu0 %v526
        %597 = vmatmul.f32.gmra.mxu0 %v577
        %v598 = vpop.f32.mrf.mxu0
        %v599 = vadd.f32 0.0, %v598
        %600 = vmatmul.f32.gmra.mxu0 %v579
        %v601 = vpop.f32.mrf.mxu0
        %v602 = vadd.f32 0.0, %v601
        %603 = vdwg.mxu0
        %v604 = vmul.f32 %v599, %v524
        %v605 = vmul.f32 %v602, %v525
        %608 = vrot.lane.b32.xlu0 %v604, 12
        %v609 = vpop.permute.xlu0 %608
        %610 = vrot.lane.b32.xlu0 %v605, 12
        %v611 = vpop.permute.xlu0 %610
        %v614 = vadd.f32 %v571, %v609
        %v615 = vadd.f32 %v572, %v611
        %618 = vrot.lane.b32.xlu0 %v561, 124
        %v619 = vpop.permute.xlu0 %618
        %620 = vrot.lane.b32.xlu0 %v562, 124
        %v621 = vpop.permute.xlu0 %620
        %624 = vrot.lane.b32.xlu0 %v561, 120
        %v625 = vpop.permute.xlu0 %624
        %626 = vrot.lane.b32.xlu0 %v562, 120
        %v627 = vpop.permute.xlu0 %626
        %630 = vrot.lane.b32.xlu0 %v561, 116
        %v631 = vpop.permute.xlu0 %630
        %632 = vrot.lane.b32.xlu0 %v562, 116
        %v633 = vpop.permute.xlu0 %632
        %v636 = vpack.c.bf16 %v561, %v561
        %v637 = vpack.c.bf16 %v562, %v562
        %v638 = vpack.c.bf16 %v619, %v619
        %v639 = vpack.c.bf16 %v621, %v621
        %v640 = vpack.c.bf16 %v625, %v625
        %v641 = vpack.c.bf16 %v627, %v627
        %v642 = vpack.c.bf16 %v631, %v631
        %v643 = vpack.c.bf16 %v633, %v633
        %646 = vrot.lane.b32.xlu0 %v614, 124
        %v647 = vpop.permute.xlu0 %646
        %648 = vrot.lane.b32.xlu0 %v615, 124
        %v649 = vpop.permute.xlu0 %648
        %652 = vrot.lane.b32.xlu0 %v614, 120
        %v653 = vpop.permute.xlu0 %652
        %654 = vrot.lane.b32.xlu0 %v615, 120
        %v655 = vpop.permute.xlu0 %654
        %658 = vrot.lane.b32.xlu0 %v614, 116
        %v659 = vpop.permute.xlu0 %658
        %660 = vrot.lane.b32.xlu0 %v615, 116
        %v661 = vpop.permute.xlu0 %660
        %v664 = vpack.c.bf16 %v614, %v614
        %v665 = vpack.c.bf16 %v615, %v615
        %v666 = vpack.c.bf16 %v647, %v647
        %v667 = vpack.c.bf16 %v649, %v649
        %v668 = vpack.c.bf16 %v653, %v653
        %v669 = vpack.c.bf16 %v655, %v655
        %v670 = vpack.c.bf16 %v659, %v659
        %v671 = vpack.c.bf16 %v661, %v661
        %674 = vrot.lane.b32.xlu0 %v517, 112
        %v675 = vpop.permute.xlu0 %674
        %676 = vrot.lane.b32.xlu0 %v520, 112
        %v677 = vpop.permute.xlu0 %676
        %680 = vrot.lane.b32.xlu0 %v517, 96
        %v681 = vpop.permute.xlu0 %680
        %682 = vrot.lane.b32.xlu0 %v520, 96
        %v683 = vpop.permute.xlu0 %682
        %686 = vrot.lane.b32.xlu0 %v517, 80
        %v687 = vpop.permute.xlu0 %686
        %688 = vrot.lane.b32.xlu0 %v520, 80
        %v689 = vpop.permute.xlu0 %688
        %v692 = vpack.c.bf16 %v517, %v517
        %v693 = vpack.c.bf16 %v520, %v520
        %v694 = vpack.c.bf16 %v675, %v675
        %v695 = vpack.c.bf16 %v677, %v677
        %v696 = vpack.c.bf16 %v681, %v681
        %v697 = vpack.c.bf16 %v683, %v683
        %v698 = vpack.c.bf16 %v687, %v687
        %v699 = vpack.c.bf16 %v689, %v689
        %v702 = vunpack.c.l.b16 %v636
        %v703 = vunpack.c.l.b16 %v637
        %v704 = vpack.c.b16 %v703, %v702
        %v707 = vunpack.c.l.b16 %v664
        %v708 = vunpack.c.l.b16 %v665
        %v709 = vpack.c.b16 %v708, %v707
        %710 = vrot.lane.b32.xlu0 %v709, 116
        %v711 = vpop.permute.xlu0 %710
        %vm712 = vcmask 31744
        %v714 = vsel %vm712, %v704, 0
        %v717 = vsel %vm712, %v711, 0
        %719 = vmatpush.bf16.xpose.msra.mxu0 0
        %720 = vmatpush.bf16.xpose.msra.mxu0 0
        %721 = vmatpush.bf16.xpose.msra.mxu0 0
        %722 = vmatpush.bf16.xpose.msra.mxu0 0
        %723 = vmatpush.bf16.xpose.msra.mxu0 0
        %724 = vmatpush.bf16.xpose.msra.mxu0 0
        %725 = vmatpush.bf16.xpose.msra.mxu0 0
        %726 = vmatpush.bf16.xpose.msra.mxu0 %v717
        %727 = vmatmul.bf16.gmra.mxu0 %v714
        %v728 = vpop.f32.mrf.mxu0
        %v729 = vadd.f32 0.0, %v728
        %v730 = vpop.f32.mrf.mxu0
        %v731 = vadd.f32 0.0, %v730
        %732 = vdwg.mxu0
        %v735 = vunpack.c.l.b16 %v638
        %v736 = vunpack.c.l.b16 %v639
        %v737 = vpack.c.b16 %v736, %v735
        %v740 = vunpack.c.l.b16 %v666
        %v741 = vunpack.c.l.b16 %v667
        %v742 = vpack.c.b16 %v741, %v740
        %743 = vrot.lane.b32.xlu0 %v742, 116
        %v744 = vpop.permute.xlu0 %743
        %v746 = vsel %vm712, %v737, 0
        %v749 = vsel %vm712, %v744, 0
        %751 = vmatpush.bf16.xpose.msra.mxu0 0
        %752 = vmatpush.bf16.xpose.msra.mxu0 0
        %753 = vmatpush.bf16.xpose.msra.mxu0 0
        %754 = vmatpush.bf16.xpose.msra.mxu0 0
        %755 = vmatpush.bf16.xpose.msra.mxu0 0
        %756 = vmatpush.bf16.xpose.msra.mxu0 0
        %757 = vmatpush.bf16.xpose.msra.mxu0 0
        %758 = vmatpush.bf16.xpose.msra.mxu0 %v749
        %759 = vmatmul.bf16.gmra.mxu0 %v746
        %v760 = vpop.f32.mrf.mxu0
        %v761 = vadd.f32 0.0, %v760
        %v762 = vpop.f32.mrf.mxu0
        %v763 = vadd.f32 0.0, %v762
        %764 = vdwg.mxu0
        %v767 = vunpack.c.l.b16 %v640
        %v768 = vunpack.c.l.b16 %v641
        %v769 = vpack.c.b16 %v768, %v767
        %v772 = vunpack.c.l.b16 %v668
        %v773 = vunpack.c.l.b16 %v669
        %v774 = vpack.c.b16 %v773, %v772
        %775 = vrot.lane.b32.xlu0 %v774, 116
        %v776 = vpop.permute.xlu0 %775
        %v778 = vsel %vm712, %v769, 0
        %v781 = vsel %vm712, %v776, 0
        %783 = vmatpush.bf16.xpose.msra.mxu0 0
        %784 = vmatpush.bf16.xpose.msra.mxu0 0
        %785 = vmatpush.bf16.xpose.msra.mxu0 0
        %786 = vmatpush.bf16.xpose.msra.mxu0 0
        %787 = vmatpush.bf16.xpose.msra.mxu0 0
        %788 = vmatpush.bf16.xpose.msra.mxu0 0
        %789 = vmatpush.bf16.xpose.msra.mxu0 0
        %790 = vmatpush.bf16.xpose.msra.mxu0 %v781
        %791 = vmatmul.bf16.gmra.mxu0 %v778
        %v792 = vpop.f32.mrf.mxu0
        %v793 = vadd.f32 0.0, %v792
        %v794 = vpop.f32.mrf.mxu0
        %v795 = vadd.f32 0.0, %v794
        %796 = vdwg.mxu0
        %v799 = vunpack.c.l.b16 %v642
        %v800 = vunpack.c.l.b16 %v643
        %v801 = vpack.c.b16 %v800, %v799
        %v804 = vunpack.c.l.b16 %v670
        %v805 = vunpack.c.l.b16 %v671
        %v806 = vpack.c.b16 %v805, %v804
        %807 = vrot.lane.b32.xlu0 %v806, 116
        %v808 = vpop.permute.xlu0 %807
        %v810 = vsel %vm712, %v801, 0
        %v813 = vsel %vm712, %v808, 0
        %815 = vmatpush.bf16.xpose.msra.mxu0 0
        %816 = vmatpush.bf16.xpose.msra.mxu0 0
        %817 = vmatpush.bf16.xpose.msra.mxu0 0
        %818 = vmatpush.bf16.xpose.msra.mxu0 0
        %819 = vmatpush.bf16.xpose.msra.mxu0 0
        %820 = vmatpush.bf16.xpose.msra.mxu0 0
        %821 = vmatpush.bf16.xpose.msra.mxu0 0
        %822 = vmatpush.bf16.xpose.msra.mxu0 %v813
        %823 = vmatmul.bf16.gmra.mxu0 %v810
        %v824 = vpop.f32.mrf.mxu0
        %v825 = vadd.f32 0.0, %v824
        %v826 = vpop.f32.mrf.mxu0
        %v827 = vadd.f32 0.0, %v826
        %828 = vdwg.mxu0
        %v829 = vlaneseq
        %v830 = vand.u32 %v829, 127
        %vm831 = vcmp.lt.s32.totalorder %v830, 12
        %v832 = vsel %vm831, 1, 0
        %vm833 = vcmp.eq.s32.totalorder %v832, 1
        %v834 = vsel %vm833, %v729, -1e+30
        %v835 = vsel %vm833, %v731, -1e+30
        %v836 = vsel %vm833, %v761, -1e+30
        %v837 = vsel %vm833, %v763, -1e+30
        %v838 = vsel %vm833, %v793, -1e+30
        %v839 = vsel %vm833, %v795, -1e+30
        %v840 = vsel %vm833, %v825, -1e+30
        %v841 = vsel %vm833, %v827, -1e+30
        %v842 = vsel %vm418, %v834, -inf
        %843 = vmax.xlane.f32.xlu0 %v842
        %v844 = vpop.xlane.xlu0 %843
        %v845 = vsel %vm418, %v835, -inf
        %846 = vmax.xlane.f32.xlu0 %v845
        %v847 = vpop.xlane.xlu0 %846
        %v848 = vsel %vm418, %v836, -inf
        %849 = vmax.xlane.f32.xlu0 %v848
        %v850 = vpop.xlane.xlu0 %849
        %v851 = vsel %vm418, %v837, -inf
        %852 = vmax.xlane.f32.xlu0 %v851
        %v853 = vpop.xlane.xlu0 %852
        %v854 = vsel %vm418, %v838, -inf
        %855 = vmax.xlane.f32.xlu0 %v854
        %v856 = vpop.xlane.xlu0 %855
        %v857 = vsel %vm418, %v839, -inf
        %858 = vmax.xlane.f32.xlu0 %v857
        %v859 = vpop.xlane.xlu0 %858
        %v860 = vsel %vm418, %v840, -inf
        %861 = vmax.xlane.f32.xlu0 %v860
        %v862 = vpop.xlane.xlu0 %861
        %v863 = vsel %vm418, %v841, -inf
        %864 = vmax.xlane.f32.xlu0 %v863
        %v865 = vpop.xlane.xlu0 %864
        %v866 = vsub.f32 %v834, %v844
        %v867 = vsub.f32 %v835, %v847
        %v868 = vsub.f32 %v836, %v850
        %v869 = vsub.f32 %v837, %v853
        %v870 = vsub.f32 %v838, %v856
        %v871 = vsub.f32 %v839, %v859
        %v872 = vsub.f32 %v840, %v862
        %v873 = vsub.f32 %v841, %v865
        %v874 = vmul.f32 %v866, 1.442695
        %v875 = vpow.pop %v874
        %v876 = vmul.f32 %v867, 1.442695
        %v877 = vpow.pop %v876
        %v878 = vmul.f32 %v868, 1.442695
        %v879 = vpow.pop %v878
        %v880 = vmul.f32 %v869, 1.442695
        %v881 = vpow.pop %v880
        %v882 = vmul.f32 %v870, 1.442695
        %v883 = vpow.pop %v882
        %v884 = vmul.f32 %v871, 1.442695
        %v885 = vpow.pop %v884
        %v886 = vmul.f32 %v872, 1.442695
        %v887 = vpow.pop %v886
        %v888 = vmul.f32 %v873, 1.442695
        %v889 = vpow.pop %v888
        %v890 = vsel %vm418, %v875, 0.0
        %891 = vadd.xlane.f32.xlu0 %v890
        %v892 = vpop.xlane.xlu0 %891
        %v893 = vsel %vm418, %v877, 0.0
        %894 = vadd.xlane.f32.xlu0 %v893
        %v895 = vpop.xlane.xlu0 %894
        %v896 = vsel %vm418, %v879, 0.0
        %897 = vadd.xlane.f32.xlu0 %v896
        %v898 = vpop.xlane.xlu0 %897
        %v899 = vsel %vm418, %v881, 0.0
        %900 = vadd.xlane.f32.xlu0 %v899
        %v901 = vpop.xlane.xlu0 %900
        %v902 = vsel %vm418, %v883, 0.0
        %903 = vadd.xlane.f32.xlu0 %v902
        %v904 = vpop.xlane.xlu0 %903
        %v905 = vsel %vm418, %v885, 0.0
        %906 = vadd.xlane.f32.xlu0 %v905
        %v907 = vpop.xlane.xlu0 %906
        %v908 = vsel %vm418, %v887, 0.0
        %909 = vadd.xlane.f32.xlu0 %v908
        %v910 = vpop.xlane.xlu0 %909
        %v911 = vsel %vm418, %v889, 0.0
        %912 = vadd.xlane.f32.xlu0 %v911
        %v913 = vpop.xlane.xlu0 %912
        %v914 = vpack.c.bf16 %v875, %v875
        %v915 = vpack.c.bf16 %v877, %v877
        %v916 = vpack.c.bf16 %v879, %v879
        %v917 = vpack.c.bf16 %v881, %v881
        %v918 = vpack.c.bf16 %v883, %v883
        %v919 = vpack.c.bf16 %v885, %v885
        %v920 = vpack.c.bf16 %v887, %v887
        %v921 = vpack.c.bf16 %v889, %v889
        %v924 = vunpack.c.l.b16 %v914
        %v925 = vunpack.c.l.b16 %v915
        %v926 = vpack.c.b16 %v925, %v924
        %v929 = vunpack.c.l.b16 %v692
        %v930 = vunpack.c.l.b16 %v693
        %v931 = vpack.c.b16 %v930, %v929
        %v934 = vsel %vm418, %v926, 0
        %936 = vmatpush.bf16.msra.mxu0 0
        %937 = vmatpush.bf16.msra.mxu0 0
        %938 = vmatpush.bf16.msra.mxu0 0
        %939 = vmatpush.bf16.msra.mxu0 0
        %940 = vmatpush.bf16.msra.mxu0 0
        %941 = vmatpush.bf16.msra.mxu0 0
        %942 = vmatpush.bf16.msra.mxu0 0
        %943 = vmatpush.bf16.msra.mxu0 %v931
        %944 = vmatmul.bf16.gmra.mxu0 %v934
        %v945 = vpop.f32.mrf.mxu0
        %v946 = vadd.f32 0.0, %v945
        %v947 = vpop.f32.mrf.mxu0
        %v948 = vadd.f32 0.0, %v947
        %949 = vdwg.mxu0
        %v952 = vunpack.c.l.b16 %v916
        %v953 = vunpack.c.l.b16 %v917
        %v954 = vpack.c.b16 %v953, %v952
        %v957 = vunpack.c.l.b16 %v694
        %v958 = vunpack.c.l.b16 %v695
        %v959 = vpack.c.b16 %v958, %v957
        %v962 = vsel %vm418, %v954, 0
        %964 = vmatpush.bf16.msra.mxu0 0
        %965 = vmatpush.bf16.msra.mxu0 0
        %966 = vmatpush.bf16.msra.mxu0 0
        %967 = vmatpush.bf16.msra.mxu0 0
        %968 = vmatpush.bf16.msra.mxu0 0
        %969 = vmatpush.bf16.msra.mxu0 0
        %970 = vmatpush.bf16.msra.mxu0 0
        %971 = vmatpush.bf16.msra.mxu0 %v959
        %972 = vmatmul.bf16.gmra.mxu0 %v962
        %v973 = vpop.f32.mrf.mxu0
        %v974 = vadd.f32 0.0, %v973
        %v975 = vpop.f32.mrf.mxu0
        %v976 = vadd.f32 0.0, %v975
        %977 = vdwg.mxu0
        %v980 = vunpack.c.l.b16 %v918
        %v981 = vunpack.c.l.b16 %v919
        %v982 = vpack.c.b16 %v981, %v980
        %v985 = vunpack.c.l.b16 %v696
        %v986 = vunpack.c.l.b16 %v697
        %v987 = vpack.c.b16 %v986, %v985
        %v990 = vsel %vm418, %v982, 0
        %992 = vmatpush.bf16.msra.mxu0 0
        %993 = vmatpush.bf16.msra.mxu0 0
        %994 = vmatpush.bf16.msra.mxu0 0
        %995 = vmatpush.bf16.msra.mxu0 0
        %996 = vmatpush.bf16.msra.mxu0 0
        %997 = vmatpush.bf16.msra.mxu0 0
        %998 = vmatpush.bf16.msra.mxu0 0
        %999 = vmatpush.bf16.msra.mxu0 %v987
        %1000 = vmatmul.bf16.gmra.mxu0 %v990
        %v1001 = vpop.f32.mrf.mxu0
        %v1002 = vadd.f32 0.0, %v1001
        %v1003 = vpop.f32.mrf.mxu0
        %v1004 = vadd.f32 0.0, %v1003
        %1005 = vdwg.mxu0
        %v1008 = vunpack.c.l.b16 %v920
        %v1009 = vunpack.c.l.b16 %v921
        %v1010 = vpack.c.b16 %v1009, %v1008
        %v1013 = vunpack.c.l.b16 %v698
        %v1014 = vunpack.c.l.b16 %v699
        %v1015 = vpack.c.b16 %v1014, %v1013
        %v1018 = vsel %vm418, %v1010, 0
        %1020 = vmatpush.bf16.msra.mxu0 0
        %1021 = vmatpush.bf16.msra.mxu0 0
        %1022 = vmatpush.bf16.msra.mxu0 0
        %1023 = vmatpush.bf16.msra.mxu0 0
        %1024 = vmatpush.bf16.msra.mxu0 0
        %1025 = vmatpush.bf16.msra.mxu0 0
        %1026 = vmatpush.bf16.msra.mxu0 0
        %1027 = vmatpush.bf16.msra.mxu0 %v1015
        %1028 = vmatmul.bf16.gmra.mxu0 %v1018
        %v1029 = vpop.f32.mrf.mxu0
        %v1030 = vadd.f32 0.0, %v1029
        %v1031 = vpop.f32.mrf.mxu0
        %v1032 = vadd.f32 0.0, %v1031
        %1033 = vdwg.mxu0
        %v1034 = vrcp.pop %v892
        %v1035 = vrcp.pop %v895
        %v1036 = vrcp.pop %v898
        %v1037 = vrcp.pop %v901
        %v1038 = vrcp.pop %v904
        %v1039 = vrcp.pop %v907
        %v1040 = vrcp.pop %v910
        %v1041 = vrcp.pop %v913
        %v1042 = vmul.f32 %v946, %v1034
        %v1043 = vmul.f32 %v948, %v1035
        %v1044 = vmul.f32 %v974, %v1036
        %v1045 = vmul.f32 %v976, %v1037
        %v1046 = vmul.f32 %v1002, %v1038
        %v1047 = vmul.f32 %v1004, %v1039
        %v1048 = vmul.f32 %v1030, %v1040
        %v1049 = vmul.f32 %v1032, %v1041
        %v1050 = vsel %vm418, %v1042, 0.0
        %v1051 = vsel %vm418, %v1044, 0.0
        %v1052 = vadd.f32 %v1050, %v1051
        %v1053 = vsel %vm418, %v1046, 0.0
        %v1054 = vadd.f32 %v1052, %v1053
        %v1055 = vsel %vm418, %v1048, 0.0
        %v1056 = vadd.f32 %v1054, %v1055
        %v1057 = vsel %vm418, %v1043, 0.0
        %v1058 = vsel %vm418, %v1045, 0.0
        %v1059 = vadd.f32 %v1057, %v1058
        %v1060 = vsel %vm418, %v1047, 0.0
        %v1061 = vadd.f32 %v1059, %v1060
        %v1062 = vsel %vm418, %v1049, 0.0
        %v1063 = vadd.f32 %v1061, %v1062
        %v1064 = vld [vmem:[%s9] sm:$0x1]
        %v1066 = vperm.slane %v1064, 0
        %v1068 = vadd.f32 %v1056, %v1066
        %v1069 = vadd.f32 %v1063, %v1066
        %1070 = vst.msk [vmem:[%s407] sm:$0xff] %vm418, %v1068
        %1071 = vst.msk [vmem:[%s407 + $0x8] sm:$0xff] %vm418, %v1069
        %s1072 = smul.u32 2, %s23
        %p1073 = scmp.lt.s32.totalorder %s1072, 3
        %s1074 = scalar_select %p1073, %s1072, 3
        %s1075 = smul.addr %s1074, 8
        %s1076 = scalar_lea.vmem %s10, %s1075
        // Predicated region
        $region73: #{tpu_custom_call.1} parent=59 // pred_check
          %p1077 = pneg %p256
        $region74: #{tpu_custom_call.1} parent=59 // pred_check_branch
          %1079 = sbr.rel (%p1077) target = $region76
        $region75: #{tpu_custom_call.1} parent=59 // pred_region
          %s1080 = smul.u32 2, %s23
        $region76: #{tpu_custom_call.1} parent=59 // pred_fallthru
          _
      $region60: #{tpu_custom_call.1} parent=5 // pred_fallthru
        _
      %p1081 = scmp.le.s32.totalorder 2, %s18
      // Predicated region
      $region77: #{tpu_custom_call.1} parent=5 // pred_check
        %p1082 = pneg %p1081
      $region78: #{tpu_custom_call.1} parent=5 // pred_check_branch
        %1084 = sbr.rel (%p1082) target = $region80
      $region79: #{tpu_custom_call.1} parent=5 // pred_region
        %s1085 = ssub.s32 %s18, 2
        // Predicated region
        $region81: #{tpu_custom_call.1} parent=79 // pred_check
          %p1086 = pneg %p262
        $region82: #{tpu_custom_call.1} parent=79 // pred_check_branch
          %1088 = sbr.rel (%p1086) target = $region84
        $region83: #{tpu_custom_call.1} parent=79 // pred_region
          %s1089 = smul.u32 2, %s24
          %p1090 = scmp.lt.s32.totalorder %s1089, 3
          %s1091 = scalar_select %p1090, %s1089, 3
          %s1092 = smul.addr %s1091, 8
          %s1093 = scalar_lea.vmem %s10, %s1092
        $region84: #{tpu_custom_call.1} parent=79 // pred_fallthru
          _
      $region80: #{tpu_custom_call.1} parent=5 // pred_fallthru
        _
    $region6: #{tpu_custom_call.1} parent=1 // loop_footer
      %s22 = sadd.s32 1, %s18
    $region7: #{tpu_custom_call.1} parent=1 // loop_footer_branch
      %17 = sbr.rel target = $region3
    $region8: #{tpu_custom_call.1} parent=1 // loop_exit
      _
    %1094 = vsyncpa [#allocation3], 1
    %s1095 = scalar_lea.sflag [#allocation3], 1
    %1096 = vsyncpa %s1095, 1
    %1097 = vsyncpa [#allocation5], 1

</llo_original>
